<compile_context>
chip_gen: v7x
topology: tpu7x:2x2x1
jax: 0.10.0
libtpu: 0.0.40
codegen_flags: <defaults>
</compile_context>

<pallas_src>
import functools

import jax
import jax.numpy as jnp
import numpy as np
from jax.experimental import pallas as pl
from jax.experimental.pallas import tpu as pltpu


def _sigmoid(x):
    # Exact rewrite of the logistic: sigmoid(x) = 0.5*tanh(0.5*x) + 0.5.
    # Keeps the transcendental on the EUP slot and drops the VALU divide.
    return 0.5 * jnp.tanh(0.5 * x) + 0.5


def _gru_kernel(x_ref, wih_ref, whh_ref, gib_ref, bhn_ref, wfc_ref, bfc_ref,
                out_ref, h_ref, *, tc, bp, hp):
    """One time chunk of the GRU recurrence.

    x_ref   : (tc*bp, D)  bf16, time-major rows for this chunk
    wih_ref : (D, 3*hp)   bf16, W_ih^T (per-gate padded)
    whh_ref : (hp, 3*hp)  bf16, W_hh^T (per-gate padded)
    gib_ref : (1, 3*hp)   f32,  b_ih + [b_hr, b_hz, 0]   (folded bias)
    bhn_ref : (1, hp)     f32,  b_hn
    wfc_ref : (1, hp)     f32,  fc weight (padded)
    bfc_ref : (1, 1)      f32,  fc bias
    out_ref : (bp, 1)     f32,  sigmoid(fc(h_T))
    h_ref   : (bp, hp)    f32 VMEM scratch, hidden state carried across chunks
    """
    c = pl.program_id(0)
    n_chunks = pl.num_programs(0)

    @pl.when(c == 0)
    def _init():
        h_ref[...] = jnp.zeros_like(h_ref)

    # Hoisted input projection for this chunk: ONE (tc*bp, D)x(D, 3*hp) bf16
    # MXU matmul with f32 accumulation; folded bias added once per chunk.
    gi_all = (jnp.dot(x_ref[...], wih_ref[...],
                      preferred_element_type=jnp.float32)
              + gib_ref[...])                                    # (tc*bp, 3*hp)

    whh = whh_ref[...]                                           # (hp, 3*hp) bf16
    # Hoist the b_hn broadcast out of the unrolled time loop.
    bhn = jnp.broadcast_to(bhn_ref[...], (bp, hp))               # (bp, hp)

    # TODO(synk): keep W_hh resident in MXU weight registers across the serial
    # steps (pltpu.matmul_push_rhs once / matmul_acc_lhs per step) to avoid
    # re-streaming the RHS every timestep.

    h = h_ref[...]                                               # (bp, hp) f32
    for t in range(tc):                                          # statically unrolled
        gi = gi_all[t * bp:(t + 1) * bp, :]                      # sublane-aligned slice
        gh = jnp.dot(h.astype(jnp.bfloat16), whh,
                     preferred_element_type=jnp.float32)         # (bp, 3*hp)

        r = _sigmoid(gi[:, :hp] + gh[:, :hp])
        z = _sigmoid(gi[:, hp:2 * hp] + gh[:, hp:2 * hp])
        n = jnp.tanh(gi[:, 2 * hp:] + r * (gh[:, 2 * hp:] + bhn))
        h = n + z * (h - n)                                      # == (1-z)*n + z*h

    h_ref[...] = h

    @pl.when(c == n_chunks - 1)
    def _finalize():
        # Final FC (H -> 1) as a VPU multiply + lane reduction (no N=1 matmul).
        logits = jnp.sum(h * wfc_ref[...], axis=-1, keepdims=True) + bfc_ref[...]
        out_ref[...] = _sigmoid(logits)


def gru_net_forward(x_btd, w_ih, w_hh, b_ih, b_hh, w_fc, b_fc, *, time_chunk=None):
    """x_btd: (B, T, D) float32.  Returns (B, 1) float32 == sigmoid(fc(h_T))."""
    B, T, D = x_btd.shape
    H = w_hh.shape[1]
    Hp = ((H + 127) // 128) * 128            # per-gate pad hidden to lane width
    Bp = ((B + 7) // 8) * 8                  # pad batch to sublane width
    hpad, bpad = Hp - H, Bp - B

    if time_chunk is None or T % time_chunk != 0:
        time_chunk = T
    n_chunks = T // time_chunk

    # Time-major rows (T*Bp, D) with zero batch-pad rows: every per-step slice
    # starts on an 8-sublane boundary.
    # TODO(synk): at production T*B*D keep activations time-major upstream so
    # this transpose is not an extra HBM pass outside the kernel.
    x_tbd = jnp.transpose(x_btd, (1, 0, 2))                       # (T, B, D)
    x_tbd = jnp.pad(x_tbd, ((0, 0), (0, bpad), (0, 0)))           # (T, Bp, D)
    x_2d = x_tbd.reshape(T * Bp, D).astype(jnp.bfloat16)

    # Per-gate zero-padding H -> Hp, pre-transpose for the MXU, bf16 operands.
    wih_p = jnp.pad(w_ih.reshape(3, H, D), ((0, 0), (0, hpad), (0, 0)))
    wih_t = jnp.transpose(wih_p.reshape(3 * Hp, D)).astype(jnp.bfloat16)   # (D, 3*Hp)
    whh_p = jnp.pad(w_hh.reshape(3, H, H), ((0, 0), (0, hpad), (0, hpad)))
    whh_t = jnp.transpose(whh_p.reshape(3 * Hp, Hp)).astype(jnp.bfloat16)  # (Hp, 3*Hp)

    # Fold the r/z thirds of b_hh into the hoisted input-projection bias; only
    # b_hn (gated by r) must stay inside the recurrence.
    bih_p = jnp.pad(b_ih.reshape(3, H), ((0, 0), (0, hpad)))
    bhh_p = jnp.pad(b_hh.reshape(3, H), ((0, 0), (0, hpad)))
    gib = bih_p.at[0].add(bhh_p[0]).at[1].add(bhh_p[1]).reshape(1, 3 * Hp)
    bhn = bhh_p[2].reshape(1, Hp)

    wfc_p = jnp.pad(w_fc, ((0, 0), (0, hpad)))                    # (1, Hp)
    bfc_2 = b_fc.reshape(1, 1)

    kernel = functools.partial(_gru_kernel, tc=time_chunk, bp=Bp, hp=Hp)
    rows = time_chunk * Bp
    full = lambda c: (0, 0)

    out = pl.pallas_call(
        kernel,
        out_shape=jax.ShapeDtypeStruct((Bp, 1), jnp.float32),
        grid_spec=pltpu.PrefetchScalarGridSpec(
            num_scalar_prefetch=0,
            grid=(n_chunks,),
            in_specs=[
                pl.BlockSpec((rows, D), lambda c: (c, 0)),   # x time chunk (pipelined)
                pl.BlockSpec((D, 3 * Hp), full),             # W_ih^T  (bf16)
                pl.BlockSpec((Hp, 3 * Hp), full),            # W_hh^T  (bf16)
                pl.BlockSpec((1, 3 * Hp), full),             # folded bias
                pl.BlockSpec((1, Hp), full),                 # b_hn
                pl.BlockSpec((1, Hp), full),                 # fc weight
                pl.BlockSpec((1, 1), full),                  # fc bias
            ],
            out_specs=pl.BlockSpec((Bp, 1), full),
            scratch_shapes=[pltpu.VMEM((Bp, Hp), jnp.float32)],  # carried hidden state
        ),
        compiler_params=pltpu.CompilerParams(
            dimension_semantics=("arbitrary",),              # serial recurrence axis
            # Modest explicit budget, valid on v5e/v6e/v7x; re-derive for
            # production H/T (whh double-buffering + gi chunk dominate).
            vmem_limit_bytes=32 * 1024 * 1024),
    )(x_2d, wih_t, whh_t, gib, bhn, wfc_p, bfc_2)
    # TODO(synk): for large B, add a leading "parallel" batch grid axis so v7x's
    # second TensorCore is used.

    return out[:B]


def _reference(x_btd, w_ih, w_hh, b_ih, b_hh, w_fc, b_fc):
    """Pure-JAX f32 reference mirroring torch.nn.GRU + Linear + Sigmoid."""
    B, T, D = x_btd.shape
    H = w_hh.shape[1]
    h = jnp.zeros((B, H), jnp.float32)
    for t in range(T):
        x_t = x_btd[:, t, :]
        gi = x_t @ w_ih.T + b_ih
        gh = h @ w_hh.T + b_hh
        i_r, i_z, i_n = gi[:, :H], gi[:, H:2 * H], gi[:, 2 * H:]
        h_r, h_z, h_n = gh[:, :H], gh[:, H:2 * H], gh[:, 2 * H:]
        r = jax.nn.sigmoid(i_r + h_r)
        z = jax.nn.sigmoid(i_z + h_z)
        n = jnp.tanh(i_n + r * h_n)
        h = (1.0 - z) * n + z * h
    return jax.nn.sigmoid(h @ w_fc.T + b_fc)


if __name__ == "__main__":
    B, T, D, H = 2, 8, 16, 32   # batch, seq len, input_size, hidden_size

    key = jax.random.PRNGKey(0)
    kx, k1, k2, k3, k4, k5, k6 = jax.random.split(key, 7)

    # Deterministic parameter init (PyTorch-style uniform(-1/sqrt(H), 1/sqrt(H))).
    bound = 1.0 / np.sqrt(H)
    w_ih = jax.random.uniform(k1, (3 * H, D), jnp.float32, -bound, bound)
    w_hh = jax.random.uniform(k2, (3 * H, H), jnp.float32, -bound, bound)
    b_ih = jax.random.uniform(k3, (3 * H,), jnp.float32, -bound, bound)
    b_hh = jax.random.uniform(k4, (3 * H,), jnp.float32, -bound, bound)
    w_fc = jax.random.uniform(k5, (1, H), jnp.float32, -bound, bound)
    b_fc = jax.random.uniform(k6, (1,), jnp.float32, -bound, bound)

    x = jax.random.normal(kx, (B, T, D), jnp.float32)

    # time_chunk=4 -> grid=(2,), exercising the h-carry across grid steps.
    out = gru_net_forward(x, w_ih, w_hh, b_ih, b_hh, w_fc, b_fc, time_chunk=4)
    out = jax.block_until_ready(out)

    ref = _reference(x, w_ih, w_hh, b_ih, b_hh, w_fc, b_fc)
    assert out.shape == (B, 1)
    # bf16 MXU operands with f32 accumulation -> loosened tolerance vs f32 ref.
    np.testing.assert_allclose(np.asarray(out), np.asarray(ref), rtol=3e-2, atol=1e-2)

    print("KERNEL_OK")
</pallas_src>

<mosaic_0001>
module attributes {stable_mosaic.version = 11 : i64} {
  func.func @_gru_kernel(%arg0: i32, %arg1: memref<32x16xbf16, #tpu.memory_space<vmem>>, %arg2: memref<16x384xbf16, #tpu.memory_space<vmem>>, %arg3: memref<128x384xbf16, #tpu.memory_space<vmem>>, %arg4: memref<1x384xf32, #tpu.memory_space<vmem>>, %arg5: memref<1x128xf32, #tpu.memory_space<vmem>>, %arg6: memref<1x128xf32, #tpu.memory_space<vmem>>, %arg7: memref<1x1xf32, #tpu.memory_space<vmem>>, %arg8: memref<8x1xf32, #tpu.memory_space<vmem>>, %arg9: memref<8x128xf32, #tpu.memory_space<vmem>>) attributes {dimension_semantics = [#tpu.dimension_semantics<arbitrary>], iteration_bounds = array<i64: 2>, scalar_prefetch = 0 : i64, scratch_operands = 1 : i64, tpu.core_type = #tpu.core_type<tc>, window_params = [{transform_indices = @transform_0, window_bounds = array<i64: 32, 16>}, {pipeline_mode = #tpu.pipeline_mode<synchronous>, transform_indices = @transform_1, window_bounds = array<i64: 16, 384>}, {pipeline_mode = #tpu.pipeline_mode<synchronous>, transform_indices = @transform_2, window_bounds = array<i64: 128, 384>}, {pipeline_mode = #tpu.pipeline_mode<synchronous>, transform_indices = @transform_3, window_bounds = array<i64: 1, 384>}, {pipeline_mode = #tpu.pipeline_mode<synchronous>, transform_indices = @transform_4, window_bounds = array<i64: 1, 128>}, {pipeline_mode = #tpu.pipeline_mode<synchronous>, transform_indices = @transform_5, window_bounds = array<i64: 1, 128>}, {pipeline_mode = #tpu.pipeline_mode<synchronous>, transform_indices = @transform_6, window_bounds = array<i64: 1, 1>}, {pipeline_mode = #tpu.pipeline_mode<synchronous>, transform_indices = @transform_7, window_bounds = array<i64: 8, 1>}]} {
    %c0_i32 = arith.constant 0 : i32
    %0 = arith.cmpi eq, %arg0, %c0_i32 : i32
    %1 = arith.extui %0 : i1 to i32
    %c0_i32_0 = arith.constant 0 : i32
    %2 = arith.cmpi ne, %1, %c0_i32_0 : i32
    scf.if %2 {
      %cst_43 = arith.constant 0.000000e+00 : f32
      %146 = vector.broadcast %cst_43 : f32 to vector<8x128xf32>
      %c0_44 = arith.constant 0 : index
      %c0_45 = arith.constant 0 : index
      %147 = vector.load %arg9[%c0_44, %c0_45] : memref<8x128xf32, #tpu.memory_space<vmem>>, vector<8x128xf32>
      tpu.vector_store %arg9[%c0_44, %c0_45], %146 {strides = array<i32>} : memref<8x128xf32, #tpu.memory_space<vmem>>, vector<8x128xf32>,
    } else {
    }
    %c0 = arith.constant 0 : index
    %c0_1 = arith.constant 0 : index
    %3 = vector.load %arg1[%c0, %c0_1] : memref<32x16xbf16, #tpu.memory_space<vmem>>, vector<32x16xbf16>
    %c0_2 = arith.constant 0 : index
    %c0_3 = arith.constant 0 : index
    %4 = vector.load %arg2[%c0_2, %c0_3] : memref<16x384xbf16, #tpu.memory_space<vmem>>, vector<16x384xbf16>
    %cst = arith.constant dense<0.000000e+00> : vector<32x384xf32>
    %5 = tpu.matmul %3, %4, %cst {dimension_numbers = #tpu.dot_dimension_numbers<[1], [0], [0], [1], [0, 0, 1, 1], [], []>} : vector<32x16xbf16>, vector<16x384xbf16>, vector<32x384xf32> -> vector<32x384xf32>
    %c0_4 = arith.constant 0 : index
    %c0_5 = arith.constant 0 : index
    %6 = vector.load %arg4[%c0_4, %c0_5] : memref<1x384xf32, #tpu.memory_space<vmem>>, vector<1x384xf32>
    %7 = vector.broadcast %6 : vector<1x384xf32> to vector<32x384xf32>
    %8 = arith.addf %5, %7 : vector<32x384xf32>
    %c0_6 = arith.constant 0 : index
    %c0_7 = arith.constant 0 : index
    %9 = vector.load %arg3[%c0_6, %c0_7] : memref<128x384xbf16, #tpu.memory_space<vmem>>, vector<128x384xbf16>
    %c0_8 = arith.constant 0 : index
    %c0_9 = arith.constant 0 : index
    %10 = vector.load %arg5[%c0_8, %c0_9] : memref<1x128xf32, #tpu.memory_space<vmem>>, vector<1x128xf32>
    %11 = vector.shape_cast %10 : vector<1x128xf32> to vector<1x128xf32>
    %12 = vector.broadcast %11 : vector<1x128xf32> to vector<8x128xf32>
    %c0_10 = arith.constant 0 : index
    %c0_11 = arith.constant 0 : index
    %13 = vector.load %arg9[%c0_10, %c0_11] : memref<8x128xf32, #tpu.memory_space<vmem>>, vector<8x128xf32>
    %14 = vector.extract_strided_slice %8 {offsets = [0, 0], sizes = [8, 384], strides = [1, 1]} : vector<32x384xf32> to vector<8x384xf32>
    %15 = arith.truncf %13 : vector<8x128xf32> to vector<8x128xbf16>
    %cst_12 = arith.constant dense<0.000000e+00> : vector<8x384xf32>
    %16 = tpu.matmul %15, %9, %cst_12 {dimension_numbers = #tpu.dot_dimension_numbers<[1], [0], [0], [1], [0, 0, 1, 1], [], []>} : vector<8x128xbf16>, vector<128x384xbf16>, vector<8x384xf32> -> vector<8x384xf32>
    %17 = vector.extract_strided_slice %14 {offsets = [0, 0], sizes = [8, 128], strides = [1, 1]} : vector<8x384xf32> to vector<8x128xf32>
    %18 = vector.extract_strided_slice %16 {offsets = [0, 0], sizes = [8, 128], strides = [1, 1]} : vector<8x384xf32> to vector<8x128xf32>
    %19 = arith.addf %17, %18 : vector<8x128xf32>
    %cst_13 = arith.constant 5.000000e-01 : f32
    %20 = vector.broadcast %cst_13 : f32 to vector<8x128xf32>
    %21 = arith.mulf %20, %19 : vector<8x128xf32>
    %22 = math.tanh %21 : vector<8x128xf32>
    %cst_14 = arith.constant 5.000000e-01 : f32
    %23 = vector.broadcast %cst_14 : f32 to vector<8x128xf32>
    %24 = arith.mulf %23, %22 : vector<8x128xf32>
    %cst_15 = arith.constant 5.000000e-01 : f32
    %25 = vector.broadcast %cst_15 : f32 to vector<8x128xf32>
    %26 = arith.addf %24, %25 : vector<8x128xf32>
    %27 = vector.extract_strided_slice %14 {offsets = [0, 128], sizes = [8, 128], strides = [1, 1]} : vector<8x384xf32> to vector<8x128xf32>
    %28 = vector.extract_strided_slice %16 {offsets = [0, 128], sizes = [8, 128], strides = [1, 1]} : vector<8x384xf32> to vector<8x128xf32>
    %29 = arith.addf %27, %28 : vector<8x128xf32>
    %cst_16 = arith.constant 5.000000e-01 : f32
    %30 = vector.broadcast %cst_16 : f32 to vector<8x128xf32>
    %31 = arith.mulf %30, %29 : vector<8x128xf32>
    %32 = math.tanh %31 : vector<8x128xf32>
    %cst_17 = arith.constant 5.000000e-01 : f32
    %33 = vector.broadcast %cst_17 : f32 to vector<8x128xf32>
    %34 = arith.mulf %33, %32 : vector<8x128xf32>
    %cst_18 = arith.constant 5.000000e-01 : f32
    %35 = vector.broadcast %cst_18 : f32 to vector<8x128xf32>
    %36 = arith.addf %34, %35 : vector<8x128xf32>
    %37 = vector.extract_strided_slice %14 {offsets = [0, 256], sizes = [8, 128], strides = [1, 1]} : vector<8x384xf32> to vector<8x128xf32>
    %38 = vector.extract_strided_slice %16 {offsets = [0, 256], sizes = [8, 128], strides = [1, 1]} : vector<8x384xf32> to vector<8x128xf32>
    %39 = arith.addf %38, %12 : vector<8x128xf32>
    %40 = arith.mulf %26, %39 : vector<8x128xf32>
    %41 = arith.addf %37, %40 : vector<8x128xf32>
    %42 = math.tanh %41 : vector<8x128xf32>
    %43 = arith.subf %13, %42 : vector<8x128xf32>
    %44 = arith.mulf %36, %43 : vector<8x128xf32>
    %45 = arith.addf %42, %44 : vector<8x128xf32>
    %46 = vector.extract_strided_slice %8 {offsets = [8, 0], sizes = [8, 384], strides = [1, 1]} : vector<32x384xf32> to vector<8x384xf32>
    %47 = arith.truncf %45 : vector<8x128xf32> to vector<8x128xbf16>
    %cst_19 = arith.constant dense<0.000000e+00> : vector<8x384xf32>
    %48 = tpu.matmul %47, %9, %cst_19 {dimension_numbers = #tpu.dot_dimension_numbers<[1], [0], [0], [1], [0, 0, 1, 1], [], []>} : vector<8x128xbf16>, vector<128x384xbf16>, vector<8x384xf32> -> vector<8x384xf32>
    %49 = vector.extract_strided_slice %46 {offsets = [0, 0], sizes = [8, 128], strides = [1, 1]} : vector<8x384xf32> to vector<8x128xf32>
    %50 = vector.extract_strided_slice %48 {offsets = [0, 0], sizes = [8, 128], strides = [1, 1]} : vector<8x384xf32> to vector<8x128xf32>
    %51 = arith.addf %49, %50 : vector<8x128xf32>
    %cst_20 = arith.constant 5.000000e-01 : f32
    %52 = vector.broadcast %cst_20 : f32 to vector<8x128xf32>
    %53 = arith.mulf %52, %51 : vector<8x128xf32>
    %54 = math.tanh %53 : vector<8x128xf32>
    %cst_21 = arith.constant 5.000000e-01 : f32
    %55 = vector.broadcast %cst_21 : f32 to vector<8x128xf32>
    %56 = arith.mulf %55, %54 : vector<8x128xf32>
    %cst_22 = arith.constant 5.000000e-01 : f32
    %57 = vector.broadcast %cst_22 : f32 to vector<8x128xf32>
    %58 = arith.addf %56, %57 : vector<8x128xf32>
    %59 = vector.extract_strided_slice %46 {offsets = [0, 128], sizes = [8, 128], strides = [1, 1]} : vector<8x384xf32> to vector<8x128xf32>
    %60 = vector.extract_strided_slice %48 {offsets = [0, 128], sizes = [8, 128], strides = [1, 1]} : vector<8x384xf32> to vector<8x128xf32>
    %61 = arith.addf %59, %60 : vector<8x128xf32>
    %cst_23 = arith.constant 5.000000e-01 : f32
    %62 = vector.broadcast %cst_23 : f32 to vector<8x128xf32>
    %63 = arith.mulf %62, %61 : vector<8x128xf32>
    %64 = math.tanh %63 : vector<8x128xf32>
    %cst_24 = arith.constant 5.000000e-01 : f32
    %65 = vector.broadcast %cst_24 : f32 to vector<8x128xf32>
    %66 = arith.mulf %65, %64 : vector<8x128xf32>
    %cst_25 = arith.constant 5.000000e-01 : f32
    %67 = vector.broadcast %cst_25 : f32 to vector<8x128xf32>
    %68 = arith.addf %66, %67 : vector<8x128xf32>
    %69 = vector.extract_strided_slice %46 {offsets = [0, 256], sizes = [8, 128], strides = [1, 1]} : vector<8x384xf32> to vector<8x128xf32>
    %70 = vector.extract_strided_slice %48 {offsets = [0, 256], sizes = [8, 128], strides = [1, 1]} : vector<8x384xf32> to vector<8x128xf32>
    %71 = arith.addf %70, %12 : vector<8x128xf32>
    %72 = arith.mulf %58, %71 : vector<8x128xf32>
    %73 = arith.addf %69, %72 : vector<8x128xf32>
    %74 = math.tanh %73 : vector<8x128xf32>
    %75 = arith.subf %45, %74 : vector<8x128xf32>
    %76 = arith.mulf %68, %75 : vector<8x128xf32>
    %77 = arith.addf %74, %76 : vector<8x128xf32>
    %78 = vector.extract_strided_slice %8 {offsets = [16, 0], sizes = [8, 384], strides = [1, 1]} : vector<32x384xf32> to vector<8x384xf32>
    %79 = arith.truncf %77 : vector<8x128xf32> to vector<8x128xbf16>
    %cst_26 = arith.constant dense<0.000000e+00> : vector<8x384xf32>
    %80 = tpu.matmul %79, %9, %cst_26 {dimension_numbers = #tpu.dot_dimension_numbers<[1], [0], [0], [1], [0, 0, 1, 1], [], []>} : vector<8x128xbf16>, vector<128x384xbf16>, vector<8x384xf32> -> vector<8x384xf32>
    %81 = vector.extract_strided_slice %78 {offsets = [0, 0], sizes = [8, 128], strides = [1, 1]} : vector<8x384xf32> to vector<8x128xf32>
    %82 = vector.extract_strided_slice %80 {offsets = [0, 0], sizes = [8, 128], strides = [1, 1]} : vector<8x384xf32> to vector<8x128xf32>
    %83 = arith.addf %81, %82 : vector<8x128xf32>
    %cst_27 = arith.constant 5.000000e-01 : f32
    %84 = vector.broadcast %cst_27 : f32 to vector<8x128xf32>
    %85 = arith.mulf %84, %83 : vector<8x128xf32>
    %86 = math.tanh %85 : vector<8x128xf32>
    %cst_28 = arith.constant 5.000000e-01 : f32
    %87 = vector.broadcast %cst_28 : f32 to vector<8x128xf32>
    %88 = arith.mulf %87, %86 : vector<8x128xf32>
    %cst_29 = arith.constant 5.000000e-01 : f32
    %89 = vector.broadcast %cst_29 : f32 to vector<8x128xf32>
    %90 = arith.addf %88, %89 : vector<8x128xf32>
    %91 = vector.extract_strided_slice %78 {offsets = [0, 128], sizes = [8, 128], strides = [1, 1]} : vector<8x384xf32> to vector<8x128xf32>
    %92 = vector.extract_strided_slice %80 {offsets = [0, 128], sizes = [8, 128], strides = [1, 1]} : vector<8x384xf32> to vector<8x128xf32>
    %93 = arith.addf %91, %92 : vector<8x128xf32>
    %cst_30 = arith.constant 5.000000e-01 : f32
    %94 = vector.broadcast %cst_30 : f32 to vector<8x128xf32>
    %95 = arith.mulf %94, %93 : vector<8x128xf32>
    %96 = math.tanh %95 : vector<8x128xf32>
    %cst_31 = arith.constant 5.000000e-01 : f32
    %97 = vector.broadcast %cst_31 : f32 to vector<8x128xf32>
    %98 = arith.mulf %97, %96 : vector<8x128xf32>
    %cst_32 = arith.constant 5.000000e-01 : f32
    %99 = vector.broadcast %cst_32 : f32 to vector<8x128xf32>
    %100 = arith.addf %98, %99 : vector<8x128xf32>
    %101 = vector.extract_strided_slice %78 {offsets = [0, 256], sizes = [8, 128], strides = [1, 1]} : vector<8x384xf32> to vector<8x128xf32>
    %102 = vector.extract_strided_slice %80 {offsets = [0, 256], sizes = [8, 128], strides = [1, 1]} : vector<8x384xf32> to vector<8x128xf32>
    %103 = arith.addf %102, %12 : vector<8x128xf32>
    %104 = arith.mulf %90, %103 : vector<8x128xf32>
    %105 = arith.addf %101, %104 : vector<8x128xf32>
    %106 = math.tanh %105 : vector<8x128xf32>
    %107 = arith.subf %77, %106 : vector<8x128xf32>
    %108 = arith.mulf %100, %107 : vector<8x128xf32>
    %109 = arith.addf %106, %108 : vector<8x128xf32>
    %110 = vector.extract_strided_slice %8 {offsets = [24, 0], sizes = [8, 384], strides = [1, 1]} : vector<32x384xf32> to vector<8x384xf32>
    %111 = arith.truncf %109 : vector<8x128xf32> to vector<8x128xbf16>
    %cst_33 = arith.constant dense<0.000000e+00> : vector<8x384xf32>
    %112 = tpu.matmul %111, %9, %cst_33 {dimension_numbers = #tpu.dot_dimension_numbers<[1], [0], [0], [1], [0, 0, 1, 1], [], []>} : vector<8x128xbf16>, vector<128x384xbf16>, vector<8x384xf32> -> vector<8x384xf32>
    %113 = vector.extract_strided_slice %110 {offsets = [0, 0], sizes = [8, 128], strides = [1, 1]} : vector<8x384xf32> to vector<8x128xf32>
    %114 = vector.extract_strided_slice %112 {offsets = [0, 0], sizes = [8, 128], strides = [1, 1]} : vector<8x384xf32> to vector<8x128xf32>
    %115 = arith.addf %113, %114 : vector<8x128xf32>
    %cst_34 = arith.constant 5.000000e-01 : f32
    %116 = vector.broadcast %cst_34 : f32 to vector<8x128xf32>
    %117 = arith.mulf %116, %115 : vector<8x128xf32>
    %118 = math.tanh %117 : vector<8x128xf32>
    %cst_35 = arith.constant 5.000000e-01 : f32
    %119 = vector.broadcast %cst_35 : f32 to vector<8x128xf32>
    %120 = arith.mulf %119, %118 : vector<8x128xf32>
    %cst_36 = arith.constant 5.000000e-01 : f32
    %121 = vector.broadcast %cst_36 : f32 to vector<8x128xf32>
    %122 = arith.addf %120, %121 : vector<8x128xf32>
    %123 = vector.extract_strided_slice %110 {offsets = [0, 128], sizes = [8, 128], strides = [1, 1]} : vector<8x384xf32> to vector<8x128xf32>
    %124 = vector.extract_strided_slice %112 {offsets = [0, 128], sizes = [8, 128], strides = [1, 1]} : vector<8x384xf32> to vector<8x128xf32>
    %125 = arith.addf %123, %124 : vector<8x128xf32>
    %cst_37 = arith.constant 5.000000e-01 : f32
    %126 = vector.broadcast %cst_37 : f32 to vector<8x128xf32>
    %127 = arith.mulf %126, %125 : vector<8x128xf32>
    %128 = math.tanh %127 : vector<8x128xf32>
    %cst_38 = arith.constant 5.000000e-01 : f32
    %129 = vector.broadcast %cst_38 : f32 to vector<8x128xf32>
    %130 = arith.mulf %129, %128 : vector<8x128xf32>
    %cst_39 = arith.constant 5.000000e-01 : f32
    %131 = vector.broadcast %cst_39 : f32 to vector<8x128xf32>
    %132 = arith.addf %130, %131 : vector<8x128xf32>
    %133 = vector.extract_strided_slice %110 {offsets = [0, 256], sizes = [8, 128], strides = [1, 1]} : vector<8x384xf32> to vector<8x128xf32>
    %134 = vector.extract_strided_slice %112 {offsets = [0, 256], sizes = [8, 128], strides = [1, 1]} : vector<8x384xf32> to vector<8x128xf32>
    %135 = arith.addf %134, %12 : vector<8x128xf32>
    %136 = arith.mulf %122, %135 : vector<8x128xf32>
    %137 = arith.addf %133, %136 : vector<8x128xf32>
    %138 = math.tanh %137 : vector<8x128xf32>
    %139 = arith.subf %109, %138 : vector<8x128xf32>
    %140 = arith.mulf %132, %139 : vector<8x128xf32>
    %141 = arith.addf %138, %140 : vector<8x128xf32>
    %c0_40 = arith.constant 0 : index
    %c0_41 = arith.constant 0 : index
    %142 = vector.load %arg9[%c0_40, %c0_41] : memref<8x128xf32, #tpu.memory_space<vmem>>, vector<8x128xf32>
    tpu.vector_store %arg9[%c0_40, %c0_41], %141 {strides = array<i32>} : memref<8x128xf32, #tpu.memory_space<vmem>>, vector<8x128xf32>,
    %c1_i32 = arith.constant 1 : i32
    %143 = arith.cmpi eq, %arg0, %c1_i32 : i32
    %144 = arith.extui %143 : i1 to i32
    %c0_i32_42 = arith.constant 0 : i32
    %145 = arith.cmpi ne, %144, %c0_i32_42 : i32
    scf.if %145 {
      %c0_43 = arith.constant 0 : index
      %c0_44 = arith.constant 0 : index
      %146 = vector.load %arg6[%c0_43, %c0_44] : memref<1x128xf32, #tpu.memory_space<vmem>>, vector<1x128xf32>
      %147 = vector.broadcast %146 : vector<1x128xf32> to vector<8x128xf32>
      %148 = arith.mulf %141, %147 : vector<8x128xf32>
      %cst_45 = arith.constant dense<0.000000e+00> : vector<8xf32>
      %149 = vector.multi_reduction <add>, %148, %cst_45 [1] : vector<8x128xf32> to vector<8xf32>
      %150 = vector.shape_cast %149 : vector<8xf32> to vector<8x1xf32>
      %c0_46 = arith.constant 0 : index
      %c0_47 = arith.constant 0 : index
      %151 = vector.load %arg7[%c0_46, %c0_47] : memref<1x1xf32, #tpu.memory_space<vmem>>, vector<1x1xf32>
      %152 = vector.broadcast %151 : vector<1x1xf32> to vector<8x1xf32>
      %153 = arith.addf %150, %152 : vector<8x1xf32>
      %cst_48 = arith.constant 5.000000e-01 : f32
      %154 = vector.broadcast %cst_48 : f32 to vector<8x1xf32>
      %155 = arith.mulf %154, %153 : vector<8x1xf32>
      %156 = math.tanh %155 : vector<8x1xf32>
      %cst_49 = arith.constant 5.000000e-01 : f32
      %157 = vector.broadcast %cst_49 : f32 to vector<8x1xf32>
      %158 = arith.mulf %157, %156 : vector<8x1xf32>
      %cst_50 = arith.constant 5.000000e-01 : f32
      %159 = vector.broadcast %cst_50 : f32 to vector<8x1xf32>
      %160 = arith.addf %158, %159 : vector<8x1xf32>
      %c0_51 = arith.constant 0 : index
      %c0_52 = arith.constant 0 : index
      %161 = vector.load %arg8[%c0_51, %c0_52] : memref<8x1xf32, #tpu.memory_space<vmem>>, vector<8x1xf32>
      tpu.vector_store %arg8[%c0_51, %c0_52], %160 {strides = array<i32>} : memref<8x1xf32, #tpu.memory_space<vmem>>, vector<8x1xf32>,
    } else {
    }
    return
  }
  func.func @transform_0(%arg0: i32) -> (i32, i32) {
    %c0_i32 = arith.constant 0 : i32
    %c0_i32_0 = arith.constant 0 : i32
    return %arg0, %c0_i32 : i32, i32
  }
  func.func @transform_1(%arg0: i32) -> (i32, i32) {
    %c0_i32 = arith.constant 0 : i32
    %c0_i32_0 = arith.constant 0 : i32
    %c0_i32_1 = arith.constant 0 : i32
    return %c0_i32, %c0_i32_0 : i32, i32
  }
  func.func @transform_2(%arg0: i32) -> (i32, i32) {
    %c0_i32 = arith.constant 0 : i32
    %c0_i32_0 = arith.constant 0 : i32
    %c0_i32_1 = arith.constant 0 : i32
    return %c0_i32, %c0_i32_0 : i32, i32
  }
  func.func @transform_3(%arg0: i32) -> (i32, i32) {
    %c0_i32 = arith.constant 0 : i32
    %c0_i32_0 = arith.constant 0 : i32
    %c0_i32_1 = arith.constant 0 : i32
    return %c0_i32, %c0_i32_0 : i32, i32
  }
  func.func @transform_4(%arg0: i32) -> (i32, i32) {
    %c0_i32 = arith.constant 0 : i32
    %c0_i32_0 = arith.constant 0 : i32
    %c0_i32_1 = arith.constant 0 : i32
    return %c0_i32, %c0_i32_0 : i32, i32
  }
  func.func @transform_5(%arg0: i32) -> (i32, i32) {
    %c0_i32 = arith.constant 0 : i32
    %c0_i32_0 = arith.constant 0 : i32
    %c0_i32_1 = arith.constant 0 : i32
    return %c0_i32, %c0_i32_0 : i32, i32
  }
  func.func @transform_6(%arg0: i32) -> (i32, i32) {
    %c0_i32 = arith.constant 0 : i32
    %c0_i32_0 = arith.constant 0 : i32
    %c0_i32_1 = arith.constant 0 : i32
    return %c0_i32, %c0_i32_0 : i32, i32
  }
  func.func @transform_7(%arg0: i32) -> (i32, i32) {
    %c0_i32 = arith.constant 0 : i32
    %c0_i32_0 = arith.constant 0 : i32
    %c0_i32_1 = arith.constant 0 : i32
    return %c0_i32, %c0_i32_0 : i32, i32
  }
}

</mosaic_0001>

<llo_original>
// kernel: tpu_custom_call.1
$region0: #{tpu_custom_call.1}
  #allocation0 [shape = 'u32[]', space=smem, size = 0x4, offset = 0x4, fixed_abs, tag = 'smem constant byte address 0x4 - core index']
  #allocation1 [shape = 'u32[144,128]{1,0:T(1,128)}', space=vmem, size = 0x12000, scoped, tag = 'internal scratch']
  #allocation2 [shape = 'f32[8,128]{1,0:T(8,128)}', space=vmem, size = 0x1000, scoped, tag = 'scratch operand']
  #allocation3 [shape = 'f32[1,1]{1,0:T(1,128)S(1)}', space=vmem, size = 0x200, scoped, tag = 'scoped memory for tpu_custom_call.1']
  %s0 = inlined_call_operand.vmem [shape: bf16[64,16], index: 0, kind: input, shape index: {}]
  %s1 = inlined_call_operand.vmem [shape: bf16[16,384], index: 1, kind: input, shape index: {}]
  %s2 = inlined_call_operand.hbm [shape: bf16[128,384], index: 2, kind: input, shape index: {}]
  %s3 = inlined_call_operand.vmem [shape: f32[1,384], index: 3, kind: input, shape index: {}]
  %s4 = inlined_call_operand.vmem [shape: f32[1,128], index: 4, kind: input, shape index: {}]
  %s5 = inlined_call_operand.vmem [shape: f32[1,128], index: 5, kind: input, shape index: {}]
  %s6 = inlined_call_operand.<no memory space> [shape: f32[1,1], index: 6, kind: input, shape index: {}]
  %s7 = inlined_call_operand.vmem [shape: f32[8,1], index: 7, kind: output, shape index: {}]
  %s8 = sld [smem:[#allocation0]]
  $region73: #{tpu_custom_call.1} parent=0
    _
  %s10 = ssub.s32 1, %s8
  %s11 = scalar_select 0, %s10, %s8
  %v12 = vstv %s6
  %13 = vst [vmem:[#allocation3] sm:$0x1] %v12
  $region1: #{tpu_custom_call.1} parent=0
    #allocation4 [shape = 'u8[98304]{0}', space=vmem, size = 0x18000, scoped, tag = 'input window, operand 2, single buffered']
    #allocation5 [shape = 's32[2]{0}', space=sflag, size = 0x8, scoped, tag = 'scoped memory for tpu_custom_call.1']
    %14 = vsyncpa [#allocation5], 0
    loop: start=0, step=1, limit=4
    $region2: #{tpu_custom_call.1} parent=1 // loop_pre_header
      _
    $region3: #{tpu_custom_call.1} parent=1 // loop_header
      %s16 = sphi 0, %s20
      %p17 = scmp.ge.s32.totalorder %s16, 4
      %s26 = sphi 0, %s28
      %s29 = sphi 0, %s26
      %s30 = sphi 0, %s29
      %s46 = sphi 0, %s30
      %s50 = sphi 0, %s50
      %s52 = sphi 0, %s50
      %s53 = sphi 0, %s52
      %s67 = sphi 0, %s53
      %s71 = sphi 0, %s71
      %s73 = sphi 0, %s71
      %s74 = sphi 0, %s73
      %s88 = sphi 0, %s74
      %s92 = sphi 0, %s92
      %s94 = sphi 0, %s92
      %s95 = sphi 0, %s94
      %s109 = sphi 0, %s95
      %s113 = sphi 0, %s113
      %s115 = sphi 0, %s113
      %s116 = sphi 0, %s115
      %s130 = sphi 0, %s116
      %s134 = sphi 0, %s134
      %s136 = sphi 0, %s134
      %s137 = sphi 0, %s136
      %s151 = sphi 0, %s137
      %s155 = sphi 0, %s155
      %s157 = sphi 0, %s155
      %s158 = sphi 0, %s157
      %s172 = sphi 0, %s158
      %s176 = sphi 0, %s176
      %s178 = sphi 0, %s176
      %s179 = sphi 0, %s178
      %s193 = sphi 0, %s179
    $region4: #{tpu_custom_call.1} parent=1 // loop_header_branch
      %19 = sbr.rel (%p17) target = $region8
    $region5: #{tpu_custom_call.1} parent=1 // loop_body
      %s21 = ssub.s32 %s16, 1
      %s22 = ssub.s32 %s16, 2
      %s23 = sadd.s32 %s16, 1
      %s24 = ssub.s32 %s16, %s23
      %p25 = scmp.eq.s32.totalorder %s24, 0
      %s27 = sadd.s32 %s26, 1
      %s28 = scalar_select %p25, %s26, %s27
      %p31 = pneg %p25
      %p32 = scmp.eq.s32.totalorder %s16, 1
      %p33 = por %p31, %p32
      %p34 = scmp.ne.s32.totalorder %s26, %s29
      %p35 = scmp.eq.s32.totalorder %s16, 0
      %p36 = por %p34, %p35
      %p37 = scmp.ne.s32.totalorder %s26, %s29
      %p38 = scmp.eq.s32.totalorder %s21, 1
      %p39 = por %p37, %p38
      %p40 = scmp.ne.s32.totalorder %s29, %s30
      %p41 = scmp.eq.s32.totalorder %s21, 0
      %p42 = por %p40, %p41
      %p43 = scmp.ne.s32.totalorder %s29, %s30
      %p44 = scmp.eq.s32.totalorder %s22, 1
      %p45 = por %p43, %p44
      %p47 = scmp.ne.s32.totalorder %s30, %s46
      %p48 = scmp.eq.s32.totalorder %s22, 0
      %p49 = por %p47, %p48
      %s51 = sadd.s32 %s50, 1
      %p54 = scmp.eq.s32.totalorder %s16, 1
      %p55 = scmp.ne.s32.totalorder %s50, %s52
      %p56 = scmp.eq.s32.totalorder %s16, 0
      %p57 = por %p55, %p56
      %p58 = scmp.ne.s32.totalorder %s50, %s52
      %p59 = scmp.eq.s32.totalorder %s21, 1
      %p60 = por %p58, %p59
      %p61 = scmp.ne.s32.totalorder %s52, %s53
      %p62 = scmp.eq.s32.totalorder %s21, 0
      %p63 = por %p61, %p62
      %p64 = scmp.ne.s32.totalorder %s52, %s53
      %p65 = scmp.eq.s32.totalorder %s22, 1
      %p66 = por %p64, %p65
      %p68 = scmp.ne.s32.totalorder %s53, %s67
      %p69 = scmp.eq.s32.totalorder %s22, 0
      %p70 = por %p68, %p69
      %s72 = sadd.s32 %s71, 1
      %p75 = scmp.eq.s32.totalorder %s16, 1
      %p76 = scmp.ne.s32.totalorder %s71, %s73
      %p77 = scmp.eq.s32.totalorder %s16, 0
      %p78 = por %p76, %p77
      %p79 = scmp.ne.s32.totalorder %s71, %s73
      %p80 = scmp.eq.s32.totalorder %s21, 1
      %p81 = por %p79, %p80
      %p82 = scmp.ne.s32.totalorder %s73, %s74
      %p83 = scmp.eq.s32.totalorder %s21, 0
      %p84 = por %p82, %p83
      %p85 = scmp.ne.s32.totalorder %s73, %s74
      %p86 = scmp.eq.s32.totalorder %s22, 1
      %p87 = por %p85, %p86
      %p89 = scmp.ne.s32.totalorder %s74, %s88
      %p90 = scmp.eq.s32.totalorder %s22, 0
      %p91 = por %p89, %p90
      %s93 = sadd.s32 %s92, 1
      %p96 = scmp.eq.s32.totalorder %s16, 1
      %p97 = scmp.ne.s32.totalorder %s92, %s94
      %p98 = scmp.eq.s32.totalorder %s16, 0
      %p99 = por %p97, %p98
      %p100 = scmp.ne.s32.totalorder %s92, %s94
      %p101 = scmp.eq.s32.totalorder %s21, 1
      %p102 = por %p100, %p101
      %p103 = scmp.ne.s32.totalorder %s94, %s95
      %p104 = scmp.eq.s32.totalorder %s21, 0
      %p105 = por %p103, %p104
      %p106 = scmp.ne.s32.totalorder %s94, %s95
      %p107 = scmp.eq.s32.totalorder %s22, 1
      %p108 = por %p106, %p107
      %p110 = scmp.ne.s32.totalorder %s95, %s109
      %p111 = scmp.eq.s32.totalorder %s22, 0
      %p112 = por %p110, %p111
      %s114 = sadd.s32 %s113, 1
      %p117 = scmp.eq.s32.totalorder %s16, 1
      %p118 = scmp.ne.s32.totalorder %s113, %s115
      %p119 = scmp.eq.s32.totalorder %s16, 0
      %p120 = por %p118, %p119
      %p121 = scmp.ne.s32.totalorder %s113, %s115
      %p122 = scmp.eq.s32.totalorder %s21, 1
      %p123 = por %p121, %p122
      %p124 = scmp.ne.s32.totalorder %s115, %s116
      %p125 = scmp.eq.s32.totalorder %s21, 0
      %p126 = por %p124, %p125
      %p127 = scmp.ne.s32.totalorder %s115, %s116
      %p128 = scmp.eq.s32.totalorder %s22, 1
      %p129 = por %p127, %p128
      %p131 = scmp.ne.s32.totalorder %s116, %s130
      %p132 = scmp.eq.s32.totalorder %s22, 0
      %p133 = por %p131, %p132
      %s135 = sadd.s32 %s134, 1
      %p138 = scmp.eq.s32.totalorder %s16, 1
      %p139 = scmp.ne.s32.totalorder %s134, %s136
      %p140 = scmp.eq.s32.totalorder %s16, 0
      %p141 = por %p139, %p140
      %p142 = scmp.ne.s32.totalorder %s134, %s136
      %p143 = scmp.eq.s32.totalorder %s21, 1
      %p144 = por %p142, %p143
      %p145 = scmp.ne.s32.totalorder %s136, %s137
      %p146 = scmp.eq.s32.totalorder %s21, 0
      %p147 = por %p145, %p146
      %p148 = scmp.ne.s32.totalorder %s136, %s137
      %p149 = scmp.eq.s32.totalorder %s22, 1
      %p150 = por %p148, %p149
      %p152 = scmp.ne.s32.totalorder %s137, %s151
      %p153 = scmp.eq.s32.totalorder %s22, 0
      %p154 = por %p152, %p153
      %s156 = sadd.s32 %s155, 1
      %p159 = scmp.eq.s32.totalorder %s16, 1
      %p160 = scmp.ne.s32.totalorder %s155, %s157
      %p161 = scmp.eq.s32.totalorder %s16, 0
      %p162 = por %p160, %p161
      %p163 = scmp.ne.s32.totalorder %s155, %s157
      %p164 = scmp.eq.s32.totalorder %s21, 1
      %p165 = por %p163, %p164
      %p166 = scmp.ne.s32.totalorder %s157, %s158
      %p167 = scmp.eq.s32.totalorder %s21, 0
      %p168 = por %p166, %p167
      %p169 = scmp.ne.s32.totalorder %s157, %s158
      %p170 = scmp.eq.s32.totalorder %s22, 1
      %p171 = por %p169, %p170
      %p173 = scmp.ne.s32.totalorder %s158, %s172
      %p174 = scmp.eq.s32.totalorder %s22, 0
      %p175 = por %p173, %p174
      %s177 = sadd.s32 %s176, 1
      %p180 = scmp.eq.s32.totalorder %s16, 1
      %p181 = scmp.ne.s32.totalorder %s176, %s178
      %p182 = scmp.eq.s32.totalorder %s16, 0
      %p183 = por %p181, %p182
      %p184 = scmp.ne.s32.totalorder %s176, %s178
      %p185 = scmp.eq.s32.totalorder %s21, 1
      %p186 = por %p184, %p185
      %p187 = scmp.ne.s32.totalorder %s178, %s179
      %p188 = scmp.eq.s32.totalorder %s21, 0
      %p189 = por %p187, %p188
      %p190 = scmp.ne.s32.totalorder %s178, %s179
      %p191 = scmp.eq.s32.totalorder %s22, 1
      %p192 = por %p190, %p191
      %p194 = scmp.ne.s32.totalorder %s179, %s193
      %p195 = scmp.eq.s32.totalorder %s22, 0
      %p196 = por %p194, %p195
      %p197 = scmp.le.s32.totalorder 1, %s16
      %p198 = scmp.lt.s32.totalorder %s16, 3
      %p199 = pnand %p197, %p198
      %p200 = pneg %p199
      // Predicated region
      $region9: #{tpu_custom_call.1} parent=5 // pred_check
        _
      $region10: #{tpu_custom_call.1} parent=5 // pred_check_branch
        %202 = sbr.rel (%p199) target = $region12
      $region11: #{tpu_custom_call.1} parent=5 // pred_region
        %s203 = ssub.s32 %s16, 1
        // Predicated region
        $region13: #{tpu_custom_call.1} parent=11 // pred_check
          %p204 = pneg %p63
        $region14: #{tpu_custom_call.1} parent=11 // pred_check_branch
          %206 = sbr.rel (%p204) target = $region16
        $region15: #{tpu_custom_call.1} parent=11 // pred_region
          _
        $region16: #{tpu_custom_call.1} parent=11 // pred_fallthru
          _
        // Predicated region
        $region17: #{tpu_custom_call.1} parent=11 // pred_check
          %p207 = pneg %p84
        $region18: #{tpu_custom_call.1} parent=11 // pred_check_branch
          %209 = sbr.rel (%p207) target = $region20
        $region19: #{tpu_custom_call.1} parent=11 // pred_region
          %s211 = ssub.s32 3072, 3072
          %212 = vsyncadd [#allocation5], %s211
          %s213 = sshll.u32 [#allocation4], 4
          %s214 = int_to_ptr.vmem [resolvable:$true] %s213
          %219 = dma.hbm_to_vmem [thread:$0]  %s2, 3072, %s214, [#allocation5], 192, 192, 12
        $region20: #{tpu_custom_call.1} parent=11 // pred_fallthru
          _
        // Predicated region
        $region21: #{tpu_custom_call.1} parent=11 // pred_check
          %p220 = pneg %p105
        $region22: #{tpu_custom_call.1} parent=11 // pred_check_branch
          %222 = sbr.rel (%p220) target = $region24
        $region23: #{tpu_custom_call.1} parent=11 // pred_region
          _
        $region24: #{tpu_custom_call.1} parent=11 // pred_fallthru
          _
        // Predicated region
        $region25: #{tpu_custom_call.1} parent=11 // pred_check
          %p223 = pneg %p126
        $region26: #{tpu_custom_call.1} parent=11 // pred_check_branch
          %225 = sbr.rel (%p223) target = $region28
        $region27: #{tpu_custom_call.1} parent=11 // pred_region
          _
        $region28: #{tpu_custom_call.1} parent=11 // pred_fallthru
          _
        // Predicated region
        $region29: #{tpu_custom_call.1} parent=11 // pred_check
          %p226 = pneg %p147
        $region30: #{tpu_custom_call.1} parent=11 // pred_check_branch
          %228 = sbr.rel (%p226) target = $region32
        $region31: #{tpu_custom_call.1} parent=11 // pred_region
          _
        $region32: #{tpu_custom_call.1} parent=11 // pred_fallthru
          _
        // Predicated region
        $region33: #{tpu_custom_call.1} parent=11 // pred_check
          %p229 = pneg %p168
        $region34: #{tpu_custom_call.1} parent=11 // pred_check_branch
          %231 = sbr.rel (%p229) target = $region36
        $region35: #{tpu_custom_call.1} parent=11 // pred_region
          _
        $region36: #{tpu_custom_call.1} parent=11 // pred_fallthru
          _
      $region12: #{tpu_custom_call.1} parent=5 // pred_fallthru
        _
      %p232 = scmp.lt.s32.totalorder %s16, 2
      // Predicated region
      $region37: #{tpu_custom_call.1} parent=5 // pred_check
        %p233 = pneg %p232
      $region38: #{tpu_custom_call.1} parent=5 // pred_check_branch
        %235 = sbr.rel (%p233) target = $region40
      $region39: #{tpu_custom_call.1} parent=5 // pred_region
        // Predicated region
        $region41: #{tpu_custom_call.1} parent=39 // pred_check
          %p236 = pneg %p36
        $region42: #{tpu_custom_call.1} parent=39 // pred_check_branch
          %238 = sbr.rel (%p236) target = $region44
        $region43: #{tpu_custom_call.1} parent=39 // pred_region
          %s239 = smul.u32 4, %s16
          %p240 = scmp.lt.s32.totalorder %s239, 7
          %s241 = scalar_select %p240, %s239, 7
          %s242 = smul.addr %s241, 4
          %s243 = scalar_lea.vmem %s0, %s242
          %s244 = smul.u32 4, %s16
        $region44: #{tpu_custom_call.1} parent=39 // pred_fallthru
          _
      $region40: #{tpu_custom_call.1} parent=5 // pred_fallthru
        _
      %p245 = scmp.le.s32.totalorder 1, %s16
      %p246 = scmp.lt.s32.totalorder %s16, 3
      %p247 = pnand %p245, %p246
      %p248 = pneg %p247
      // Predicated region
      $region45: #{tpu_custom_call.1} parent=5 // pred_check
        _
      $region46: #{tpu_custom_call.1} parent=5 // pred_check_branch
        %250 = sbr.rel (%p247) target = $region48
      $region47: #{tpu_custom_call.1} parent=5 // pred_region
        %s251 = ssub.s32 %s16, 1
        // Predicated region
        $region49: #{tpu_custom_call.1} parent=47 // pred_check
          %p252 = pneg %p84
        $region50: #{tpu_custom_call.1} parent=47 // pred_check_branch
          %254 = sbr.rel (%p252) target = $region52
        $region51: #{tpu_custom_call.1} parent=47 // pred_region
          %255 = dma.done [#allocation5], 3072
        $region52: #{tpu_custom_call.1} parent=47 // pred_fallthru
          _
        %s256 = smul.u32 4, %s21
        %p257 = scmp.lt.s32.totalorder %s256, 7
        %s258 = scalar_select %p257, %s256, 7
        %s259 = smul.addr %s258, 4
        %s260 = scalar_lea.vmem %s0, %s259
        %p261 = pneg %p42
        %p262 = pneg %p39
        %p263 = pneg %p63
        %p264 = pneg %p60
        %p265 = pneg %p84
        %p266 = pneg %p81
        %p267 = pneg %p105
        %p268 = pneg %p102
        %p269 = pneg %p126
        %p270 = pneg %p123
        %p271 = pneg %p147
        %p272 = pneg %p144
        %p273 = pneg %p168
        %p274 = pneg %p165
        %p275 = pneg %p189
        %p276 = pneg %p186
        %s277 = smul.u32 4, %s21
        %p278 = scmp.lt.s32.totalorder %s277, 7
        %s279 = scalar_select %p278, %s277, 7
        %s280 = smul.addr %s279, 4
        %s281 = scalar_lea.vmem %s0, %s280
        %s282 = smul.u32 4, %s21
        %p284 = scmp.eq.s32.totalorder %s21, 0
        // Predicated region
        $region53: #{tpu_custom_call.1} parent=47 // pred_check
          %p285 = pneg %p284
        $region54: #{tpu_custom_call.1} parent=47 // pred_check_branch
          %287 = sbr.rel (%p285) target = $region56
        $region55: #{tpu_custom_call.1} parent=47 // pred_region
          %288 = vst [vmem:[#allocation2] sm:$0xff] 0.0
        $region56: #{tpu_custom_call.1} parent=47 // pred_fallthru
          _
        %v289 = vld [vmem:[%s281] sm:$0xf]
        %v290 = vld [vmem:[%s281 + $0x4] sm:$0xf]
        %v291 = vld [vmem:[%s281 + $0x8] sm:$0xf]
        %v292 = vld [vmem:[%s281 + $0xc] sm:$0xf]
        %v293 = vld [vmem:[%s1] sm:$0xff]
        %v294 = vld [vmem:[%s1 + $0x8] sm:$0xf]
        %v295 = vld [vmem:[%s1 + $0xc] sm:$0xff]
        %v296 = vld [vmem:[%s1 + $0x14] sm:$0xf]
        %v297 = vld [vmem:[%s3] sm:$0x7]
        %v299 = vlaneseq
        %v300 = vshrl.u32 %v299, 7
        %v301 = vsub.s32 0, %v300
        %v302 = vrot.slane %v297, %v301
        %v303 = vlaneseq
        %v304 = vshrl.u32 %v303, 7
        %v305 = vsub.s32 1, %v304
        %v306 = vrot.slane %v297, %v305
        %v307 = vlaneseq
        %v308 = vshrl.u32 %v307, 7
        %v309 = vsub.s32 2, %v308
        %v310 = vrot.slane %v297, %v309
        %v318 = vunpack.c.l.b16 %v289
        %v319 = vunpack.c.l.b16 %v290
        %v320 = vunpack.c.l.b16 %v291
        %v321 = vunpack.c.l.b16 %v292
        %v322 = vpack.c.b16 %v319, %v318
        %v323 = vpack.c.b16 %v321, %v320
        %v328 = vunpack.c.l.b16 %v293
        %v329 = vunpack.c.h.b16 %v293
        %v330 = vunpack.c.l.b16 %v294
        %v331 = vunpack.c.l.b16 %v295
        %v332 = vunpack.c.h.b16 %v295
        %v333 = vunpack.c.l.b16 %v296
        %v334 = vpack.c.b16 %v331, %v328
        %v335 = vpack.c.b16 %v332, %v329
        %v336 = vpack.c.b16 %v333, %v330
        %vm340 = vcmask 130048
        %v342 = vsel %vm340, %v322, 0
        %v345 = vsel %vm340, %v323, 0
        %347 = vmatprep.subr.bf16.mxu0 %v335
        %348 = vmatpush1.bf16.msra.mxu0 %v334
        %349 = vmatprep.subr.bf16.mxu0 0
        %350 = vmatpush1.bf16.msra.mxu0 0
        %351 = vmatprep.subr.bf16.mxu0 0
        %352 = vmatpush1.bf16.msra.mxu0 0
        %353 = vmatprep.subr.bf16.mxu0 0
        %354 = vmatpush1.bf16.msra.mxu0 0
        %355 = vmatprep.subr.bf16.mxu0 0
        %356 = vmatpush1.bf16.msra.mxu0 0
        %357 = vmatprep.subr.bf16.mxu0 0
        %358 = vmatpush1.bf16.msra.mxu0 0
        %359 = vmatprep.subr.bf16.mxu0 0
        %360 = vmatpush1.bf16.msra.mxu0 0
        %361 = vmatprep.subr.bf16.mxu0 0
        %362 = vmatpush1.bf16.msra.mxu0 0
        %363 = vmatprep.subr.bf16.mxu0 0
        %364 = vmatpush1.bf16.msra.mxu0 0
        %365 = vmatprep.subr.bf16.mxu0 0
        %366 = vmatpush1.bf16.msra.mxu0 0
        %367 = vmatprep.subr.bf16.mxu0 0
        %368 = vmatpush1.bf16.msra.mxu0 0
        %369 = vmatprep.subr.bf16.mxu0 0
        %370 = vmatpush1.bf16.msra.mxu0 0
        %371 = vmatprep.subr.bf16.mxu0 0
        %372 = vmatpush1.bf16.msra.mxu0 0
        %373 = vmatprep.subr.bf16.mxu0 0
        %374 = vmatpush1.bf16.msra.mxu0 0
        %375 = vmatprep.subr.bf16.mxu0 0
        %376 = vmatpush1.bf16.msra.mxu0 0
        %377 = vmatprep.subr.bf16.mxu0 0
        %378 = vmatpush1.bf16.msra.mxu0 0
        %379 = vmatprep.mubr.bf16.mxu0 0
        %380 = vmatmul.mubr.bf16.gmra.mrb[0].mxu0 %v342
        %v381 = vpop.f32.mrb[0].mxu0
        %v382 = vadd.f32 %v302, %v381
        %v383 = vpop.f32.mrb[0].mxu0
        %v384 = vadd.f32 %v306, %v383
        %v385 = vpop.f32.mrb[0].mxu0
        %v386 = vadd.f32 %v302, %v385
        %v387 = vpop.f32.mrb[0].mxu0
        %v388 = vadd.f32 %v306, %v387
        %389 = vmatprep.mubr.bf16.mxu0 0
        %390 = vmatmul.mubr.bf16.gmra.mrb[0].mxu0 %v345
        %v391 = vpop.f32.mrb[0].mxu0
        %v392 = vadd.f32 %v302, %v391
        %v393 = vpop.f32.mrb[0].mxu0
        %v394 = vadd.f32 %v306, %v393
        %v395 = vpop.f32.mrb[0].mxu0
        %v396 = vadd.f32 %v302, %v395
        %v397 = vpop.f32.mrb[0].mxu0
        %v398 = vadd.f32 %v306, %v397
        %399 = vdwg.mxu0
        %400 = vmatprep.subr.bf16.mxu0 0
        %401 = vmatpush1.bf16.msra.mxu0 %v336
        %402 = vmatprep.subr.bf16.mxu0 0
        %403 = vmatpush1.bf16.msra.mxu0 0
        %404 = vmatprep.subr.bf16.mxu0 0
        %405 = vmatpush1.bf16.msra.mxu0 0
        %406 = vmatprep.subr.bf16.mxu0 0
        %407 = vmatpush1.bf16.msra.mxu0 0
        %408 = vmatprep.subr.bf16.mxu0 0
        %409 = vmatpush1.bf16.msra.mxu0 0
        %410 = vmatprep.subr.bf16.mxu0 0
        %411 = vmatpush1.bf16.msra.mxu0 0
        %412 = vmatprep.subr.bf16.mxu0 0
        %413 = vmatpush1.bf16.msra.mxu0 0
        %414 = vmatprep.subr.bf16.mxu0 0
        %415 = vmatpush1.bf16.msra.mxu0 0
        %416 = vmatprep.subr.bf16.mxu0 0
        %417 = vmatpush1.bf16.msra.mxu0 0
        %418 = vmatprep.subr.bf16.mxu0 0
        %419 = vmatpush1.bf16.msra.mxu0 0
        %420 = vmatprep.subr.bf16.mxu0 0
        %421 = vmatpush1.bf16.msra.mxu0 0
        %422 = vmatprep.subr.bf16.mxu0 0
        %423 = vmatpush1.bf16.msra.mxu0 0
        %424 = vmatprep.subr.bf16.mxu0 0
        %425 = vmatpush1.bf16.msra.mxu0 0
        %426 = vmatprep.subr.bf16.mxu0 0
        %427 = vmatpush1.bf16.msra.mxu0 0
        %428 = vmatprep.subr.bf16.mxu0 0
        %429 = vmatpush1.bf16.msra.mxu0 0
        %430 = vmatprep.subr.bf16.mxu0 0
        %431 = vmatpush1.bf16.msra.mxu0 0
        %432 = vmatprep.mubr.bf16.mxu0 0
        %433 = vmatmul.mubr.bf16.gmra.mrb[0].mxu0 %v342
        %v434 = vpop.f32.mrb[0].mxu0
        %v435 = vadd.f32 %v310, %v434
        %v436 = vpop.f32.mrb[0].mxu0
        %v437 = vpop.f32.mrb[0].mxu0
        %v438 = vadd.f32 %v310, %v437
        %v439 = vpop.f32.mrb[0].mxu0
        %440 = vmatprep.mubr.bf16.mxu0 0
        %441 = vmatmul.mubr.bf16.gmra.mrb[0].mxu0 %v345
        %v442 = vpop.f32.mrb[0].mxu0
        %v443 = vadd.f32 %v310, %v442
        %v444 = vpop.f32.mrb[0].mxu0
        %v445 = vpop.f32.mrb[0].mxu0
        %v446 = vadd.f32 %v310, %v445
        %v447 = vpop.f32.mrb[0].mxu0
        %448 = vdwg.mxu0
        %v449 = vld [vmem:[#allocation4] sm:$0xff]
        %v450 = vld [vmem:[#allocation4 + $0x8] sm:$0xf]
        %v451 = vld [vmem:[#allocation4 + $0xc] sm:$0xff]
        %v452 = vld [vmem:[#allocation4 + $0x14] sm:$0xf]
        %v453 = vld [vmem:[#allocation4 + $0x18] sm:$0xff]
        %v454 = vld [vmem:[#allocation4 + $0x20] sm:$0xf]
        %v455 = vld [vmem:[#allocation4 + $0x24] sm:$0xff]
        %v456 = vld [vmem:[#allocation4 + $0x2c] sm:$0xf]
        %v457 = vld [vmem:[#allocation4 + $0x30] sm:$0xff]
        %v458 = vld [vmem:[#allocation4 + $0x38] sm:$0xf]
        %v459 = vld [vmem:[#allocation4 + $0x3c] sm:$0xff]
        %v460 = vld [vmem:[#allocation4 + $0x44] sm:$0xf]
        %v461 = vld [vmem:[#allocation4 + $0x48] sm:$0xff]
        %v462 = vld [vmem:[#allocation4 + $0x50] sm:$0xf]
        %v463 = vld [vmem:[#allocation4 + $0x54] sm:$0xff]
        %v464 = vld [vmem:[#allocation4 + $0x5c] sm:$0xf]
        %v465 = vld [vmem:[#allocation4 + $0x60] sm:$0xff]
        %v466 = vld [vmem:[#allocation4 + $0x68] sm:$0xf]
        %v467 = vld [vmem:[#allocation4 + $0x6c] sm:$0xff]
        %v468 = vld [vmem:[#allocation4 + $0x74] sm:$0xf]
        %v469 = vld [vmem:[#allocation4 + $0x78] sm:$0xff]
        %v470 = vld [vmem:[#allocation4 + $0x80] sm:$0xf]
        %v471 = vld [vmem:[#allocation4 + $0x84] sm:$0xff]
        %v472 = vld [vmem:[#allocation4 + $0x8c] sm:$0xf]
        %v473 = vld [vmem:[#allocation4 + $0x90] sm:$0xff]
        %v474 = vld [vmem:[#allocation4 + $0x98] sm:$0xf]
        %v475 = vld [vmem:[#allocation4 + $0x9c] sm:$0xff]
        %v476 = vld [vmem:[#allocation4 + $0xa4] sm:$0xf]
        %v477 = vld [vmem:[#allocation4 + $0xa8] sm:$0xff]
        %v478 = vld [vmem:[#allocation4 + $0xb0] sm:$0xf]
        %v479 = vld [vmem:[#allocation4 + $0xb4] sm:$0xff]
        %v480 = vld [vmem:[#allocation4 + $0xbc] sm:$0xf]
        %v481 = vld [vmem:[%s4] sm:$0x1]
        %v483 = vlaneseq
        %v484 = vshrl.u32 %v483, 7
        %v485 = vsub.s32 0, %v484
        %v486 = vrot.slane %v481, %v485
        %v488 = vld [vmem:[#allocation2] sm:$0xff]
        %v489 = vpack.c.bf16 %v488, %v488
        %v522 = vunpack.c.l.b16 %v449
        %v523 = vunpack.c.h.b16 %v449
        %v524 = vunpack.c.l.b16 %v450
        %v525 = vunpack.c.l.b16 %v451
        %v526 = vunpack.c.h.b16 %v451
        %v527 = vunpack.c.l.b16 %v452
        %v528 = vunpack.c.l.b16 %v453
        %v529 = vunpack.c.h.b16 %v453
        %v530 = vunpack.c.l.b16 %v454
        %v531 = vunpack.c.l.b16 %v455
        %v532 = vunpack.c.h.b16 %v455
        %v533 = vunpack.c.l.b16 %v456
        %v534 = vunpack.c.l.b16 %v457
        %v535 = vunpack.c.h.b16 %v457
        %v536 = vunpack.c.l.b16 %v458
        %v537 = vunpack.c.l.b16 %v459
        %v538 = vunpack.c.h.b16 %v459
        %v539 = vunpack.c.l.b16 %v460
        %v540 = vunpack.c.l.b16 %v461
        %v541 = vunpack.c.h.b16 %v461
        %v542 = vunpack.c.l.b16 %v462
        %v543 = vunpack.c.l.b16 %v463
        %v544 = vunpack.c.h.b16 %v463
        %v545 = vunpack.c.l.b16 %v464
        %v546 = vunpack.c.l.b16 %v465
        %v547 = vunpack.c.h.b16 %v465
        %v548 = vunpack.c.l.b16 %v466
        %v549 = vunpack.c.l.b16 %v467
        %v550 = vunpack.c.h.b16 %v467
        %v551 = vunpack.c.l.b16 %v468
        %v552 = vunpack.c.l.b16 %v469
        %v553 = vunpack.c.h.b16 %v469
        %v554 = vunpack.c.l.b16 %v470
        %v555 = vunpack.c.l.b16 %v471
        %v556 = vunpack.c.h.b16 %v471
        %v557 = vunpack.c.l.b16 %v472
        %v558 = vunpack.c.l.b16 %v473
        %v559 = vunpack.c.h.b16 %v473
        %v560 = vunpack.c.l.b16 %v474
        %v561 = vunpack.c.l.b16 %v475
        %v562 = vunpack.c.h.b16 %v475
        %v563 = vunpack.c.l.b16 %v476
        %v564 = vunpack.c.l.b16 %v477
        %v565 = vunpack.c.h.b16 %v477
        %v566 = vunpack.c.l.b16 %v478
        %v567 = vunpack.c.l.b16 %v479
        %v568 = vunpack.c.h.b16 %v479
        %v569 = vunpack.c.l.b16 %v480
        %v570 = vpack.c.b16 %v525, %v522
        %v571 = vpack.c.b16 %v526, %v523
        %v572 = vpack.c.b16 %v527, %v524
        %v573 = vpack.c.b16 %v531, %v528
        %v574 = vpack.c.b16 %v532, %v529
        %v575 = vpack.c.b16 %v533, %v530
        %v576 = vpack.c.b16 %v537, %v534
        %v577 = vpack.c.b16 %v538, %v535
        %v578 = vpack.c.b16 %v539, %v536
        %v579 = vpack.c.b16 %v543, %v540
        %v580 = vpack.c.b16 %v544, %v541
        %v581 = vpack.c.b16 %v545, %v542
        %v582 = vpack.c.b16 %v549, %v546
        %v583 = vpack.c.b16 %v550, %v547
        %v584 = vpack.c.b16 %v551, %v548
        %v585 = vpack.c.b16 %v555, %v552
        %v586 = vpack.c.b16 %v556, %v553
        %v587 = vpack.c.b16 %v557, %v554
        %v588 = vpack.c.b16 %v561, %v558
        %v589 = vpack.c.b16 %v562, %v559
        %v590 = vpack.c.b16 %v563, %v560
        %v591 = vpack.c.b16 %v567, %v564
        %v592 = vpack.c.b16 %v568, %v565
        %v593 = vpack.c.b16 %v569, %v566
        %618 = vmatprep.subr.bf16.mxu0 %v571
        %619 = vmatpush1.bf16.msra.mxu0 %v570
        %620 = vmatprep.subr.bf16.mxu0 %v574
        %621 = vmatpush1.bf16.msra.mxu0 %v573
        %622 = vmatprep.subr.bf16.mxu0 %v577
        %623 = vmatpush1.bf16.msra.mxu0 %v576
        %624 = vmatprep.subr.bf16.mxu0 %v580
        %625 = vmatpush1.bf16.msra.mxu0 %v579
        %626 = vmatprep.subr.bf16.mxu0 %v583
        %627 = vmatpush1.bf16.msra.mxu0 %v582
        %628 = vmatprep.subr.bf16.mxu0 %v586
        %629 = vmatpush1.bf16.msra.mxu0 %v585
        %630 = vmatprep.subr.bf16.mxu0 %v589
        %631 = vmatpush1.bf16.msra.mxu0 %v588
        %632 = vmatprep.subr.bf16.mxu0 %v592
        %633 = vmatpush1.bf16.msra.mxu0 %v591
        %634 = vmatprep.subr.bf16.mxu0 0
        %635 = vmatpush1.bf16.msra.mxu0 0
        %636 = vmatprep.subr.bf16.mxu0 0
        %637 = vmatpush1.bf16.msra.mxu0 0
        %638 = vmatprep.subr.bf16.mxu0 0
        %639 = vmatpush1.bf16.msra.mxu0 0
        %640 = vmatprep.subr.bf16.mxu0 0
        %641 = vmatpush1.bf16.msra.mxu0 0
        %642 = vmatprep.subr.bf16.mxu0 0
        %643 = vmatpush1.bf16.msra.mxu0 0
        %644 = vmatprep.subr.bf16.mxu0 0
        %645 = vmatpush1.bf16.msra.mxu0 0
        %646 = vmatprep.subr.bf16.mxu0 0
        %647 = vmatpush1.bf16.msra.mxu0 0
        %648 = vmatprep.subr.bf16.mxu0 0
        %649 = vmatpush1.bf16.msra.mxu0 0
        %650 = vmatprep.mubr.bf16.mxu0 0
        %651 = vmatmul.mubr.bf16.gmra.mrb[0].mxu0 %v489
        %v652 = vpop.f32.mrb[0].mxu0
        %v653 = vadd.f32 0.0, %v652
        %v654 = vpop.f32.mrb[0].mxu0
        %v655 = vadd.f32 0.0, %v654
        %v656 = vpop.f32.mrb[0].mxu0
        %v657 = vpop.f32.mrb[0].mxu0
        %658 = vdwg.mxu0
        %659 = vmatprep.subr.bf16.mxu0 0
        %660 = vmatpush1.bf16.msra.mxu0 %v572
        %661 = vmatprep.subr.bf16.mxu0 0
        %662 = vmatpush1.bf16.msra.mxu0 %v575
        %663 = vmatprep.subr.bf16.mxu0 0
        %664 = vmatpush1.bf16.msra.mxu0 %v578
        %665 = vmatprep.subr.bf16.mxu0 0
        %666 = vmatpush1.bf16.msra.mxu0 %v581
        %667 = vmatprep.subr.bf16.mxu0 0
        %668 = vmatpush1.bf16.msra.mxu0 %v584
        %669 = vmatprep.subr.bf16.mxu0 0
        %670 = vmatpush1.bf16.msra.mxu0 %v587
        %671 = vmatprep.subr.bf16.mxu0 0
        %672 = vmatpush1.bf16.msra.mxu0 %v590
        %673 = vmatprep.subr.bf16.mxu0 0
        %674 = vmatpush1.bf16.msra.mxu0 %v593
        %675 = vmatprep.subr.bf16.mxu0 0
        %676 = vmatpush1.bf16.msra.mxu0 0
        %677 = vmatprep.subr.bf16.mxu0 0
        %678 = vmatpush1.bf16.msra.mxu0 0
        %679 = vmatprep.subr.bf16.mxu0 0
        %680 = vmatpush1.bf16.msra.mxu0 0
        %681 = vmatprep.subr.bf16.mxu0 0
        %682 = vmatpush1.bf16.msra.mxu0 0
        %683 = vmatprep.subr.bf16.mxu0 0
        %684 = vmatpush1.bf16.msra.mxu0 0
        %685 = vmatprep.subr.bf16.mxu0 0
        %686 = vmatpush1.bf16.msra.mxu0 0
        %687 = vmatprep.subr.bf16.mxu0 0
        %688 = vmatpush1.bf16.msra.mxu0 0
        %689 = vmatprep.subr.bf16.mxu0 0
        %690 = vmatpush1.bf16.msra.mxu0 0
        %691 = vmatprep.mubr.bf16.mxu0 0
        %692 = vmatmul.mubr.bf16.gmra.mrb[0].mxu0 %v489
        %v693 = vpop.f32.mrb[0].mxu0
        %v694 = vadd.f32 0.0, %v693
        %v695 = vpop.f32.mrb[0].mxu0
        %v696 = vpop.f32.mrb[0].mxu0
        %v697 = vpop.f32.mrb[0].mxu0
        %698 = vdwg.mxu0
        %v699 = vadd.f32 %v382, %v653
        %v700 = vmul.f32 %v699, 0.5
        %v701 = vtanh.pop %v700
        %v702 = vmul.f32 %v701, 0.5
        %v703 = vadd.f32 %v702, 0.5
        %v704 = vadd.f32 %v384, %v655
        %v705 = vmul.f32 %v704, 0.5
        %v706 = vtanh.pop %v705
        %v707 = vmul.f32 %v706, 0.5
        %v708 = vadd.f32 %v707, 0.5
        %v709 = vadd.f32 %v694, %v486
        %v710 = vmul.f32 %v703, %v709
        %v711 = vadd.f32 %v435, %v710
        %v712 = vtanh.pop %v711
        %v713 = vsub.f32 %v488, %v712
        %v714 = vmul.f32 %v708, %v713
        %v715 = vadd.f32 %v712, %v714
        %v716 = vpack.c.bf16 %v715, %v715
        %717 = vmatprep.subr.bf16.mxu0 %v571
        %718 = vmatpush1.bf16.msra.mxu0 %v570
        %719 = vmatprep.subr.bf16.mxu0 %v574
        %720 = vmatpush1.bf16.msra.mxu0 %v573
        %721 = vmatprep.subr.bf16.mxu0 %v577
        %722 = vmatpush1.bf16.msra.mxu0 %v576
        %723 = vmatprep.subr.bf16.mxu0 %v580
        %724 = vmatpush1.bf16.msra.mxu0 %v579
        %725 = vmatprep.subr.bf16.mxu0 %v583
        %726 = vmatpush1.bf16.msra.mxu0 %v582
        %727 = vmatprep.subr.bf16.mxu0 %v586
        %728 = vmatpush1.bf16.msra.mxu0 %v585
        %729 = vmatprep.subr.bf16.mxu0 %v589
        %730 = vmatpush1.bf16.msra.mxu0 %v588
        %731 = vmatprep.subr.bf16.mxu0 %v592
        %732 = vmatpush1.bf16.msra.mxu0 %v591
        %733 = vmatprep.subr.bf16.mxu0 0
        %734 = vmatpush1.bf16.msra.mxu0 0
        %735 = vmatprep.subr.bf16.mxu0 0
        %736 = vmatpush1.bf16.msra.mxu0 0
        %737 = vmatprep.subr.bf16.mxu0 0
        %738 = vmatpush1.bf16.msra.mxu0 0
        %739 = vmatprep.subr.bf16.mxu0 0
        %740 = vmatpush1.bf16.msra.mxu0 0
        %741 = vmatprep.subr.bf16.mxu0 0
        %742 = vmatpush1.bf16.msra.mxu0 0
        %743 = vmatprep.subr.bf16.mxu0 0
        %744 = vmatpush1.bf16.msra.mxu0 0
        %745 = vmatprep.subr.bf16.mxu0 0
        %746 = vmatpush1.bf16.msra.mxu0 0
        %747 = vmatprep.subr.bf16.mxu0 0
        %748 = vmatpush1.bf16.msra.mxu0 0
        %749 = vmatprep.mubr.bf16.mxu0 0
        %750 = vmatmul.mubr.bf16.gmra.mrb[0].mxu0 %v716
        %v751 = vpop.f32.mrb[0].mxu0
        %v752 = vadd.f32 0.0, %v751
        %v753 = vpop.f32.mrb[0].mxu0
        %v754 = vadd.f32 0.0, %v753
        %v755 = vpop.f32.mrb[0].mxu0
        %v756 = vpop.f32.mrb[0].mxu0
        %757 = vdwg.mxu0
        %758 = vmatprep.subr.bf16.mxu0 0
        %759 = vmatpush1.bf16.msra.mxu0 %v572
        %760 = vmatprep.subr.bf16.mxu0 0
        %761 = vmatpush1.bf16.msra.mxu0 %v575
        %762 = vmatprep.subr.bf16.mxu0 0
        %763 = vmatpush1.bf16.msra.mxu0 %v578
        %764 = vmatprep.subr.bf16.mxu0 0
        %765 = vmatpush1.bf16.msra.mxu0 %v581
        %766 = vmatprep.subr.bf16.mxu0 0
        %767 = vmatpush1.bf16.msra.mxu0 %v584
        %768 = vmatprep.subr.bf16.mxu0 0
        %769 = vmatpush1.bf16.msra.mxu0 %v587
        %770 = vmatprep.subr.bf16.mxu0 0
        %771 = vmatpush1.bf16.msra.mxu0 %v590
        %772 = vmatprep.subr.bf16.mxu0 0
        %773 = vmatpush1.bf16.msra.mxu0 %v593
        %774 = vmatprep.subr.bf16.mxu0 0
        %775 = vmatpush1.bf16.msra.mxu0 0
        %776 = vmatprep.subr.bf16.mxu0 0
        %777 = vmatpush1.bf16.msra.mxu0 0
        %778 = vmatprep.subr.bf16.mxu0 0
        %779 = vmatpush1.bf16.msra.mxu0 0
        %780 = vmatprep.subr.bf16.mxu0 0
        %781 = vmatpush1.bf16.msra.mxu0 0
        %782 = vmatprep.subr.bf16.mxu0 0
        %783 = vmatpush1.bf16.msra.mxu0 0
        %784 = vmatprep.subr.bf16.mxu0 0
        %785 = vmatpush1.bf16.msra.mxu0 0
        %786 = vmatprep.subr.bf16.mxu0 0
        %787 = vmatpush1.bf16.msra.mxu0 0
        %788 = vmatprep.subr.bf16.mxu0 0
        %789 = vmatpush1.bf16.msra.mxu0 0
        %790 = vmatprep.mubr.bf16.mxu0 0
        %791 = vmatmul.mubr.bf16.gmra.mrb[0].mxu0 %v716
        %v792 = vpop.f32.mrb[0].mxu0
        %v793 = vadd.f32 0.0, %v792
        %v794 = vpop.f32.mrb[0].mxu0
        %v795 = vpop.f32.mrb[0].mxu0
        %v796 = vpop.f32.mrb[0].mxu0
        %797 = vdwg.mxu0
        %v798 = vadd.f32 %v386, %v752
        %v799 = vmul.f32 %v798, 0.5
        %v800 = vtanh.pop %v799
        %v801 = vmul.f32 %v800, 0.5
        %v802 = vadd.f32 %v801, 0.5
        %v803 = vadd.f32 %v388, %v754
        %v804 = vmul.f32 %v803, 0.5
        %v805 = vtanh.pop %v804
        %v806 = vmul.f32 %v805, 0.5
        %v807 = vadd.f32 %v806, 0.5
        %v808 = vadd.f32 %v793, %v486
        %v809 = vmul.f32 %v802, %v808
        %v810 = vadd.f32 %v438, %v809
        %v811 = vtanh.pop %v810
        %v812 = vsub.f32 %v715, %v811
        %v813 = vmul.f32 %v807, %v812
        %v814 = vadd.f32 %v811, %v813
        %v815 = vpack.c.bf16 %v814, %v814
        %816 = vmatprep.subr.bf16.mxu0 %v571
        %817 = vmatpush1.bf16.msra.mxu0 %v570
        %818 = vmatprep.subr.bf16.mxu0 %v574
        %819 = vmatpush1.bf16.msra.mxu0 %v573
        %820 = vmatprep.subr.bf16.mxu0 %v577
        %821 = vmatpush1.bf16.msra.mxu0 %v576
        %822 = vmatprep.subr.bf16.mxu0 %v580
        %823 = vmatpush1.bf16.msra.mxu0 %v579
        %824 = vmatprep.subr.bf16.mxu0 %v583
        %825 = vmatpush1.bf16.msra.mxu0 %v582
        %826 = vmatprep.subr.bf16.mxu0 %v586
        %827 = vmatpush1.bf16.msra.mxu0 %v585
        %828 = vmatprep.subr.bf16.mxu0 %v589
        %829 = vmatpush1.bf16.msra.mxu0 %v588
        %830 = vmatprep.subr.bf16.mxu0 %v592
        %831 = vmatpush1.bf16.msra.mxu0 %v591
        %832 = vmatprep.subr.bf16.mxu0 0
        %833 = vmatpush1.bf16.msra.mxu0 0
        %834 = vmatprep.subr.bf16.mxu0 0
        %835 = vmatpush1.bf16.msra.mxu0 0
        %836 = vmatprep.subr.bf16.mxu0 0
        %837 = vmatpush1.bf16.msra.mxu0 0
        %838 = vmatprep.subr.bf16.mxu0 0
        %839 = vmatpush1.bf16.msra.mxu0 0
        %840 = vmatprep.subr.bf16.mxu0 0
        %841 = vmatpush1.bf16.msra.mxu0 0
        %842 = vmatprep.subr.bf16.mxu0 0
        %843 = vmatpush1.bf16.msra.mxu0 0
        %844 = vmatprep.subr.bf16.mxu0 0
        %845 = vmatpush1.bf16.msra.mxu0 0
        %846 = vmatprep.subr.bf16.mxu0 0
        %847 = vmatpush1.bf16.msra.mxu0 0
        %848 = vmatprep.mubr.bf16.mxu0 0
        %849 = vmatmul.mubr.bf16.gmra.mrb[0].mxu0 %v815
        %v850 = vpop.f32.mrb[0].mxu0
        %v851 = vadd.f32 0.0, %v850
        %v852 = vpop.f32.mrb[0].mxu0
        %v853 = vadd.f32 0.0, %v852
        %v854 = vpop.f32.mrb[0].mxu0
        %v855 = vpop.f32.mrb[0].mxu0
        %856 = vdwg.mxu0
        %857 = vmatprep.subr.bf16.mxu0 0
        %858 = vmatpush1.bf16.msra.mxu0 %v572
        %859 = vmatprep.subr.bf16.mxu0 0
        %860 = vmatpush1.bf16.msra.mxu0 %v575
        %861 = vmatprep.subr.bf16.mxu0 0
        %862 = vmatpush1.bf16.msra.mxu0 %v578
        %863 = vmatprep.subr.bf16.mxu0 0
        %864 = vmatpush1.bf16.msra.mxu0 %v581
        %865 = vmatprep.subr.bf16.mxu0 0
        %866 = vmatpush1.bf16.msra.mxu0 %v584
        %867 = vmatprep.subr.bf16.mxu0 0
        %868 = vmatpush1.bf16.msra.mxu0 %v587
        %869 = vmatprep.subr.bf16.mxu0 0
        %870 = vmatpush1.bf16.msra.mxu0 %v590
        %871 = vmatprep.subr.bf16.mxu0 0
        %872 = vmatpush1.bf16.msra.mxu0 %v593
        %873 = vmatprep.subr.bf16.mxu0 0
        %874 = vmatpush1.bf16.msra.mxu0 0
        %875 = vmatprep.subr.bf16.mxu0 0
        %876 = vmatpush1.bf16.msra.mxu0 0
        %877 = vmatprep.subr.bf16.mxu0 0
        %878 = vmatpush1.bf16.msra.mxu0 0
        %879 = vmatprep.subr.bf16.mxu0 0
        %880 = vmatpush1.bf16.msra.mxu0 0
        %881 = vmatprep.subr.bf16.mxu0 0
        %882 = vmatpush1.bf16.msra.mxu0 0
        %883 = vmatprep.subr.bf16.mxu0 0
        %884 = vmatpush1.bf16.msra.mxu0 0
        %885 = vmatprep.subr.bf16.mxu0 0
        %886 = vmatpush1.bf16.msra.mxu0 0
        %887 = vmatprep.subr.bf16.mxu0 0
        %888 = vmatpush1.bf16.msra.mxu0 0
        %889 = vmatprep.mubr.bf16.mxu0 0
        %890 = vmatmul.mubr.bf16.gmra.mrb[0].mxu0 %v815
        %v891 = vpop.f32.mrb[0].mxu0
        %v892 = vadd.f32 0.0, %v891
        %v893 = vpop.f32.mrb[0].mxu0
        %v894 = vpop.f32.mrb[0].mxu0
        %v895 = vpop.f32.mrb[0].mxu0
        %896 = vdwg.mxu0
        %v897 = vadd.f32 %v392, %v851
        %v898 = vmul.f32 %v897, 0.5
        %v899 = vtanh.pop %v898
        %v900 = vmul.f32 %v899, 0.5
        %v901 = vadd.f32 %v900, 0.5
        %v902 = vadd.f32 %v394, %v853
        %v903 = vmul.f32 %v902, 0.5
        %v904 = vtanh.pop %v903
        %v905 = vmul.f32 %v904, 0.5
        %v906 = vadd.f32 %v905, 0.5
        %v907 = vadd.f32 %v892, %v486
        %v908 = vmul.f32 %v901, %v907
        %v909 = vadd.f32 %v443, %v908
        %v910 = vtanh.pop %v909
        %v911 = vsub.f32 %v814, %v910
        %v912 = vmul.f32 %v906, %v911
        %v913 = vadd.f32 %v910, %v912
        %v914 = vpack.c.bf16 %v913, %v913
        %915 = vmatprep.subr.bf16.mxu0 %v571
        %916 = vmatpush1.bf16.msra.mxu0 %v570
        %917 = vmatprep.subr.bf16.mxu0 %v574
        %918 = vmatpush1.bf16.msra.mxu0 %v573
        %919 = vmatprep.subr.bf16.mxu0 %v577
        %920 = vmatpush1.bf16.msra.mxu0 %v576
        %921 = vmatprep.subr.bf16.mxu0 %v580
        %922 = vmatpush1.bf16.msra.mxu0 %v579
        %923 = vmatprep.subr.bf16.mxu0 %v583
        %924 = vmatpush1.bf16.msra.mxu0 %v582
        %925 = vmatprep.subr.bf16.mxu0 %v586
        %926 = vmatpush1.bf16.msra.mxu0 %v585
        %927 = vmatprep.subr.bf16.mxu0 %v589
        %928 = vmatpush1.bf16.msra.mxu0 %v588
        %929 = vmatprep.subr.bf16.mxu0 %v592
        %930 = vmatpush1.bf16.msra.mxu0 %v591
        %931 = vmatprep.subr.bf16.mxu0 0
        %932 = vmatpush1.bf16.msra.mxu0 0
        %933 = vmatprep.subr.bf16.mxu0 0
        %934 = vmatpush1.bf16.msra.mxu0 0
        %935 = vmatprep.subr.bf16.mxu0 0
        %936 = vmatpush1.bf16.msra.mxu0 0
        %937 = vmatprep.subr.bf16.mxu0 0
        %938 = vmatpush1.bf16.msra.mxu0 0
        %939 = vmatprep.subr.bf16.mxu0 0
        %940 = vmatpush1.bf16.msra.mxu0 0
        %941 = vmatprep.subr.bf16.mxu0 0
        %942 = vmatpush1.bf16.msra.mxu0 0
        %943 = vmatprep.subr.bf16.mxu0 0
        %944 = vmatpush1.bf16.msra.mxu0 0
        %945 = vmatprep.subr.bf16.mxu0 0
        %946 = vmatpush1.bf16.msra.mxu0 0
        %947 = vmatprep.mubr.bf16.mxu0 0
        %948 = vmatmul.mubr.bf16.gmra.mrb[0].mxu0 %v914
        %v949 = vpop.f32.mrb[0].mxu0
        %v950 = vadd.f32 0.0, %v949
        %v951 = vpop.f32.mrb[0].mxu0
        %v952 = vadd.f32 0.0, %v951
        %v953 = vpop.f32.mrb[0].mxu0
        %v954 = vpop.f32.mrb[0].mxu0
        %955 = vdwg.mxu0
        %956 = vmatprep.subr.bf16.mxu0 0
        %957 = vmatpush1.bf16.msra.mxu0 %v572
        %958 = vmatprep.subr.bf16.mxu0 0
        %959 = vmatpush1.bf16.msra.mxu0 %v575
        %960 = vmatprep.subr.bf16.mxu0 0
        %961 = vmatpush1.bf16.msra.mxu0 %v578
        %962 = vmatprep.subr.bf16.mxu0 0
        %963 = vmatpush1.bf16.msra.mxu0 %v581
        %964 = vmatprep.subr.bf16.mxu0 0
        %965 = vmatpush1.bf16.msra.mxu0 %v584
        %966 = vmatprep.subr.bf16.mxu0 0
        %967 = vmatpush1.bf16.msra.mxu0 %v587
        %968 = vmatprep.subr.bf16.mxu0 0
        %969 = vmatpush1.bf16.msra.mxu0 %v590
        %970 = vmatprep.subr.bf16.mxu0 0
        %971 = vmatpush1.bf16.msra.mxu0 %v593
        %972 = vmatprep.subr.bf16.mxu0 0
        %973 = vmatpush1.bf16.msra.mxu0 0
        %974 = vmatprep.subr.bf16.mxu0 0
        %975 = vmatpush1.bf16.msra.mxu0 0
        %976 = vmatprep.subr.bf16.mxu0 0
        %977 = vmatpush1.bf16.msra.mxu0 0
        %978 = vmatprep.subr.bf16.mxu0 0
        %979 = vmatpush1.bf16.msra.mxu0 0
        %980 = vmatprep.subr.bf16.mxu0 0
        %981 = vmatpush1.bf16.msra.mxu0 0
        %982 = vmatprep.subr.bf16.mxu0 0
        %983 = vmatpush1.bf16.msra.mxu0 0
        %984 = vmatprep.subr.bf16.mxu0 0
        %985 = vmatpush1.bf16.msra.mxu0 0
        %986 = vmatprep.subr.bf16.mxu0 0
        %987 = vmatpush1.bf16.msra.mxu0 0
        %988 = vmatprep.mubr.bf16.mxu0 0
        %989 = vmatmul.mubr.bf16.gmra.mrb[0].mxu0 %v914
        %v990 = vpop.f32.mrb[0].mxu0
        %v991 = vadd.f32 0.0, %v990
        %v992 = vpop.f32.mrb[0].mxu0
        %v993 = vpop.f32.mrb[0].mxu0
        %v994 = vpop.f32.mrb[0].mxu0
        %995 = vdwg.mxu0
        %v996 = vadd.f32 %v396, %v950
        %v997 = vmul.f32 %v996, 0.5
        %v998 = vtanh.pop %v997
        %v999 = vmul.f32 %v998, 0.5
        %v1000 = vadd.f32 %v999, 0.5
        %v1001 = vadd.f32 %v398, %v952
        %v1002 = vmul.f32 %v1001, 0.5
        %v1003 = vtanh.pop %v1002
        %v1004 = vmul.f32 %v1003, 0.5
        %v1005 = vadd.f32 %v1004, 0.5
        %v1006 = vadd.f32 %v991, %v486
        %v1007 = vmul.f32 %v1000, %v1006
        %v1008 = vadd.f32 %v446, %v1007
        %v1009 = vtanh.pop %v1008
        %v1010 = vsub.f32 %v913, %v1009
        %v1011 = vmul.f32 %v1005, %v1010
        %v1012 = vadd.f32 %v1009, %v1011
        %1013 = vst [vmem:[#allocation2] sm:$0xff] %v1012
        %p1014 = scmp.eq.s32.totalorder %s21, 1
        // Predicated region
        $region57: #{tpu_custom_call.1} parent=47 // pred_check
          %p1015 = pneg %p1014
        $region58: #{tpu_custom_call.1} parent=47 // pred_check_branch
          %1017 = sbr.rel (%p1015) target = $region60
        $region59: #{tpu_custom_call.1} parent=47 // pred_region
          %v1018 = vld [vmem:[%s5] sm:$0x1]
          %v1020 = vlaneseq
          %v1021 = vshrl.u32 %v1020, 7
          %v1022 = vsub.s32 0, %v1021
          %v1023 = vrot.slane %v1018, %v1022
          %v1025 = vmul.f32 %v1012, %v1023
          %1026 = vadd.xlane.f32.xlu0 %v1025
          %v1027 = vpop.xlane.xlu0 %1026
          %v1028 = vld [vmem:[#allocation3] sm:$0x1]
          %v1030 = vlaneseq
          %v1031 = vshrl.u32 %v1030, 7
          %v1032 = vsub.s32 0, %v1031
          %v1033 = vrot.slane %v1028, %v1032
          %v1035 = vadd.f32 %v1027, %v1033
          %v1036 = vmul.f32 %v1035, 0.5
          %v1037 = vtanh.pop %v1036
          %v1038 = vmul.f32 %v1037, 0.5
          %v1039 = vadd.f32 %v1038, 0.5
          %vm1040 = vcmask 7168
          %1041 = vst.msk [vmem:[%s7] sm:$0xff] %vm1040, %v1039
        $region60: #{tpu_custom_call.1} parent=47 // pred_fallthru
          _
        // Predicated region
        $region61: #{tpu_custom_call.1} parent=47 // pred_check
          %p1042 = pneg %p186
        $region62: #{tpu_custom_call.1} parent=47 // pred_check_branch
          %1044 = sbr.rel (%p1042) target = $region64
        $region63: #{tpu_custom_call.1} parent=47 // pred_region
          _
        $region64: #{tpu_custom_call.1} parent=47 // pred_fallthru
          _
        // Predicated region
        $region65: #{tpu_custom_call.1} parent=47 // pred_check
          %p1045 = pneg %p186
        $region66: #{tpu_custom_call.1} parent=47 // pred_check_branch
          %1047 = sbr.rel (%p1045) target = $region68
        $region67: #{tpu_custom_call.1} parent=47 // pred_region
          _
        $region68: #{tpu_custom_call.1} parent=47 // pred_fallthru
          _
      $region48: #{tpu_custom_call.1} parent=5 // pred_fallthru
        _
      %p1048 = scmp.le.s32.totalorder 2, %s16
      // Predicated region
      $region69: #{tpu_custom_call.1} parent=5 // pred_check
        %p1049 = pneg %p1048
      $region70: #{tpu_custom_call.1} parent=5 // pred_check_branch
        %1051 = sbr.rel (%p1049) target = $region72
      $region71: #{tpu_custom_call.1} parent=5 // pred_region
        %s1052 = ssub.s32 %s16, 2
      $region72: #{tpu_custom_call.1} parent=5 // pred_fallthru
        _
    $region6: #{tpu_custom_call.1} parent=1 // loop_footer
      %s20 = sadd.s32 1, %s16
    $region7: #{tpu_custom_call.1} parent=1 // loop_footer_branch
      %15 = sbr.rel target = $region3
    $region8: #{tpu_custom_call.1} parent=1 // loop_exit
      _
    %1053 = vsyncpa [#allocation5], 1
    %s1054 = scalar_lea.sflag [#allocation5], 1
    %1055 = vsyncpa %s1054, 1

</llo_original>
